<compile_context>
chip_gen: v6e
topology: v6e:2x2x1
jax: 0.10.0
libtpu: 0.0.40
codegen_flags: <defaults>
</compile_context>

<pallas_src>
import functools

import jax
import jax.numpy as jnp
from jax.experimental import pallas as pl
from jax.experimental.pallas import tpu as pltpu


# ---------------------------------------------------------------------------
# helpers
# ---------------------------------------------------------------------------
def _gelu(x):
    # nn.GELU() default = exact (erf-based) GELU
    return 0.5 * x * (1.0 + jax.lax.erf(x * 0.7071067811865476))


def _pick_chunk(hw, cap):
    """HW-chunk size: a multiple of 128 (preferring one that divides hw) or the full hw."""
    if hw % 128 != 0:
        if hw <= max(cap, 128):
            return hw                      # full extent (block == array dim)
        return max((min(cap, hw) // 128) * 128, 128)   # 128-multiple + in-kernel tail mask
    cap = max(128, (min(cap, hw) // 128) * 128)
    for k in range(cap, 127, -128):        # largest 128-multiple <= cap that divides hw
        if hw % k == 0:
            return k
    return cap


# ---------------------------------------------------------------------------
# Kernel A: backbone (1x1 conv + ReLU) + global mean pool, chunked over HW
# ---------------------------------------------------------------------------
def _backbone_pool_kernel(x_ref, wbt_ref, bb_ref, pooled_ref, acc_ref, *,
                          hw, chunk, sub, inv_hw):
    j = pl.program_id(1)

    @pl.when(j == 0)
    def _():
        acc_ref[...] = jnp.zeros_like(acc_ref)

    nF = acc_ref.shape[0]
    n_sub = chunk // sub
    need_mask = (hw % chunk) != 0                       # static: ragged HW tail
    bias = jnp.broadcast_to(bb_ref[...], (nF, sub))     # hoisted out of the sub-block loop

    def step(start):
        # fp32 chunk read from HBM; cast to bf16 right before the MXU matmul
        xs = x_ref[0, :, pl.ds(start, sub)].astype(jnp.bfloat16)        # (C, sub)
        f = jnp.dot(wbt_ref[...], xs, preferred_element_type=jnp.float32)  # (F, sub) fp32
        f = jnp.maximum(f + bias, 0.0)                                   # bias + ReLU
        if need_mask:
            col = jax.lax.broadcasted_iota(jnp.int32, f.shape, 1) + (j * chunk + start)
            f = jnp.where(col < hw, f, 0.0)
        acc_ref[...] += f                                                # lane-wide VPU add

    if n_sub == 1:
        step(0)
    else:
        def body(i, carry):
            step(pl.multiple_of(i * sub, sub))
            return carry
        jax.lax.fori_loop(0, n_sub, body, 0, unroll=True)

    @pl.when(j == pl.num_programs(1) - 1)
    def _():
        # single cross-lane reduce + scale, once per image
        pooled_ref[...] = (jnp.sum(acc_ref[...], axis=1, keepdims=True)
                           * inv_hw).reshape(1, nF, 1).astype(pooled_ref.dtype)


def backbone_pool(x_nchw, wb, bb, *, hw_chunk_cap=2048):
    """x: (N, C, H, W) fp32 -> pooled features (N, F) bf16."""
    N, C, H, W = x_nchw.shape
    HW = H * W
    F = wb.shape[1]

    chunk = _pick_chunk(HW, hw_chunk_cap)
    n_chunks = pl.cdiv(HW, chunk)
    sub = 256 if chunk % 256 == 0 else (128 if chunk % 128 == 0 else chunk)

    x = x_nchw.reshape(N, C, HW)                         # no pad / no cast: fp32 streamed
    wbt = wb.T.astype(jnp.bfloat16)                      # (F, C), cast once (param-only)
    bb_col = bb.reshape(F, 1).astype(jnp.float32)        # (F, 1)

    kernel = functools.partial(_backbone_pool_kernel,
                               hw=HW, chunk=chunk, sub=sub, inv_hw=1.0 / HW)

    pooled = pl.pallas_call(
        kernel,
        out_shape=jax.ShapeDtypeStruct((N, F, 1), jnp.bfloat16),
        grid_spec=pltpu.PrefetchScalarGridSpec(
            num_scalar_prefetch=0,
            grid=(N, n_chunks),
            in_specs=[
                pl.BlockSpec((1, C, chunk), lambda n, j: (n, 0, j)),
                pl.BlockSpec((F, C), lambda n, j: (0, 0)),   # weights stay resident
                pl.BlockSpec((F, 1), lambda n, j: (0, 0)),
            ],
            out_specs=pl.BlockSpec((1, F, 1), lambda n, j: (n, 0, 0)),
            scratch_shapes=[pltpu.VMEM((F, sub), jnp.float32)],
        ),
        compiler_params=pltpu.CompilerParams(
            dimension_semantics=("parallel", "arbitrary"),
            vmem_limit_bytes=32 * 1024 * 1024,
        ),
    )(x, wbt, bb_col)
    return pooled.reshape(N, F)                          # bf16, fed straight to the head


# ---------------------------------------------------------------------------
# Kernel B1: DINO head MLP (3 layers + GELU) + L2-normalize -> bottleneck z (bf16)
# ---------------------------------------------------------------------------
def _dino_mlp_kernel(pooled_ref, w1_ref, b1_ref, w2_ref, b2_ref, w3_ref, b3_ref, z_ref):
    p = pooled_ref[...]                                              # (M, F) bf16
    h = _gelu(jnp.dot(p, w1_ref[...], preferred_element_type=jnp.float32) + b1_ref[...])
    h = _gelu(jnp.dot(h.astype(jnp.bfloat16), w2_ref[...],
                      preferred_element_type=jnp.float32) + b2_ref[...])
    z = jnp.dot(h.astype(jnp.bfloat16), w3_ref[...],
                preferred_element_type=jnp.float32) + b3_ref[...]    # (M, Bn) fp32
    # L2 normalize (torch F.normalize, p=2, dim=-1, eps=1e-12) via rsqrt (EUP)
    ssq = jnp.sum(z * z, axis=-1, keepdims=True)
    z = z * jax.lax.rsqrt(jnp.maximum(ssq, 1e-24))
    z_ref[...] = z.astype(z_ref.dtype)                               # bf16 (cast once)


# ---------------------------------------------------------------------------
# Kernel B2: weight-normalized last layer, tiled over the projection dim (parallel grid)
# ---------------------------------------------------------------------------
def _dino_proj_kernel(z_ref, wlt_ref, out_ref):
    out_ref[...] = jnp.dot(z_ref[...], wlt_ref[...], preferred_element_type=jnp.float32)


def dino_head(pooled, params, *, p_tile_cap=1024):
    """pooled: (M, F) bf16/fp32 -> projections (M, P) fp32."""
    M, F = pooled.shape
    H = params["w1"].shape[1]
    Bn = params["w3"].shape[1]
    P = params["wl"].shape[0]

    # weight-norm of the last layer hoisted out of the kernel (parameter-only work, g == 1)
    wl = params["wl"]
    wlt = (wl / jnp.sqrt(jnp.sum(wl * wl, axis=-1, keepdims=True))).T      # (Bn, P)

    pooled_b = pooled if pooled.dtype == jnp.bfloat16 else pooled.astype(jnp.bfloat16)

    # --- B1: MLP + L2 norm (single step; all views of this network in one call) ---
    z = pl.pallas_call(
        _dino_mlp_kernel,
        out_shape=jax.ShapeDtypeStruct((M, Bn), jnp.bfloat16),
        grid_spec=pltpu.PrefetchScalarGridSpec(
            num_scalar_prefetch=0,
            grid=(1,),
            in_specs=[
                pl.BlockSpec((M, F), lambda i: (0, 0)),
                pl.BlockSpec((F, H), lambda i: (0, 0)),
                pl.BlockSpec((1, H), lambda i: (0, 0)),
                pl.BlockSpec((H, H), lambda i: (0, 0)),
                pl.BlockSpec((1, H), lambda i: (0, 0)),
                pl.BlockSpec((H, Bn), lambda i: (0, 0)),
                pl.BlockSpec((1, Bn), lambda i: (0, 0)),
            ],
            out_specs=pl.BlockSpec((M, Bn), lambda i: (0, 0)),
        ),
        compiler_params=pltpu.CompilerParams(
            dimension_semantics=("arbitrary",),
            vmem_limit_bytes=48 * 1024 * 1024,
        ),
    )(pooled_b,
      params["w1"].astype(jnp.bfloat16), params["b1"].astype(jnp.float32),
      params["w2"].astype(jnp.bfloat16), params["b2"].astype(jnp.float32),
      params["w3"].astype(jnp.bfloat16), params["b3"].astype(jnp.float32))

    # --- B2: z @ wlt tiled over P; grid is fully parallel (megacore-shardable on v7x) ---
    if P % 128 == 0:
        tp, k, cap = 128, 128, min(p_tile_cap, P)
        while k <= cap:
            if P % k == 0:
                tp = k
            k += 128
    else:
        tp = P
    n_tiles = P // tp

    out = pl.pallas_call(
        _dino_proj_kernel,
        out_shape=jax.ShapeDtypeStruct((M, P), jnp.float32),
        grid_spec=pltpu.PrefetchScalarGridSpec(
            num_scalar_prefetch=0,
            grid=(n_tiles,),
            in_specs=[
                pl.BlockSpec((M, Bn), lambda j: (0, 0)),     # z stays resident
                pl.BlockSpec((Bn, tp), lambda j: (0, j)),
            ],
            out_specs=pl.BlockSpec((M, tp), lambda j: (0, j)),
        ),
        compiler_params=pltpu.CompilerParams(
            dimension_semantics=("parallel",),
            vmem_limit_bytes=48 * 1024 * 1024,
        ),
    )(z, wlt.astype(jnp.bfloat16))
    return out


# ---------------------------------------------------------------------------
# DINO.forward semantics
# ---------------------------------------------------------------------------
def _pooled_per_view(views, wb, bb, hw_chunk_cap):
    """Group equal-shape views into single stacked backbone calls; return pooled per view."""
    pooled = [None] * len(views)
    groups = {}
    for i, v in enumerate(views):
        groups.setdefault(v.shape[1:], []).append(i)
    for _, idxs in groups.items():
        xs = jnp.concatenate([views[i] for i in idxs], axis=0)
        pg = backbone_pool(xs, wb, bb, hw_chunk_cap=hw_chunk_cap)
        off = 0
        for i in idxs:
            b = views[i].shape[0]
            pooled[i] = pg[off:off + b]
            off += b
    return pooled


def dino_forward(x0, x1, xc, student_params, teacher_params,
                 momentum_teacher=0.996, hw_chunk_cap=2048):
    # ---- student on [x0, x1, *xc]: stacked backbone calls + one head call (big M)
    student_views = [x0, x1] + list(xc)
    pooled_s = _pooled_per_view(student_views, student_params["wb"], student_params["bb"],
                                hw_chunk_cap)
    z_s_all = dino_head(jnp.concatenate(pooled_s, axis=0), student_params)
    z_s, off = [], 0
    for v in student_views:
        z_s.append(z_s_all[off:off + v.shape[0]])
        off += v.shape[0]

    # ---- no-grad momentum update of teacher params (glue, plain JAX)
    teacher_params = jax.tree_util.tree_map(
        lambda t, s: momentum_teacher * t + (1.0 - momentum_teacher) * s,
        teacher_params, student_params)

    # ---- teacher on [x0, x1]
    teacher_views = [x0, x1]
    pooled_t = _pooled_per_view(teacher_views, teacher_params["wb"], teacher_params["bb"],
                                hw_chunk_cap)
    z_t_all = dino_head(jnp.concatenate(pooled_t, axis=0), teacher_params)
    b0 = x0.shape[0]
    z_t = [z_t_all[:b0], z_t_all[b0:b0 + x1.shape[0]]]
    return z_s, z_t, teacher_params


# ---------------------------------------------------------------------------
# Deterministic parameter construction (torch layouts: wl is weight_norm "v", (out, in))
# ---------------------------------------------------------------------------
def make_params(key, in_channels, feature_size, hidden_dim, bottleneck_dim, projection_dim):
    ks = jax.random.split(key, 8)
    scale = 0.05
    return {
        "wb": scale * jax.random.normal(ks[0], (in_channels, feature_size), jnp.float32),
        "bb": scale * jax.random.normal(ks[1], (1, feature_size), jnp.float32),
        "w1": scale * jax.random.normal(ks[2], (feature_size, hidden_dim), jnp.float32),
        "b1": scale * jax.random.normal(ks[3], (1, hidden_dim), jnp.float32),
        "w2": scale * jax.random.normal(ks[4], (hidden_dim, hidden_dim), jnp.float32),
        "b2": scale * jax.random.normal(ks[5], (1, hidden_dim), jnp.float32),
        "w3": scale * jax.random.normal(ks[6], (hidden_dim, bottleneck_dim), jnp.float32),
        "b3": jnp.zeros((1, bottleneck_dim), jnp.float32),
        "wl": scale * jax.random.normal(ks[7], (projection_dim, bottleneck_dim), jnp.float32),
    }


# ---------------------------------------------------------------------------
# Plain-JAX reference (same bf16-input / fp32-accumulate numerics) for validation
# ---------------------------------------------------------------------------
def _ref_view(x_nchw, p):
    N, C, H, W = x_nchw.shape
    xb = x_nchw.reshape(N, C, H * W).astype(jnp.bfloat16)
    wbt = p["wb"].T.astype(jnp.bfloat16)
    feat = jnp.einsum("fc,nct->ntf", wbt, xb, preferred_element_type=jnp.float32)
    feat = jnp.maximum(feat + p["bb"].astype(jnp.float32), 0.0)
    pooled = jnp.mean(feat, axis=1)                               # (N, F) fp32
    pb = pooled.astype(jnp.bfloat16)
    h = _gelu(jnp.dot(pb, p["w1"].astype(jnp.bfloat16),
                      preferred_element_type=jnp.float32) + p["b1"])
    h = _gelu(jnp.dot(h.astype(jnp.bfloat16), p["w2"].astype(jnp.bfloat16),
                      preferred_element_type=jnp.float32) + p["b2"])
    z = jnp.dot(h.astype(jnp.bfloat16), p["w3"].astype(jnp.bfloat16),
                preferred_element_type=jnp.float32) + p["b3"]
    z = z / jnp.maximum(jnp.linalg.norm(z, axis=-1, keepdims=True), 1e-12)
    wl = p["wl"]
    wd = wl / jnp.linalg.norm(wl, axis=-1, keepdims=True)
    return jnp.dot(z.astype(jnp.bfloat16), wd.T.astype(jnp.bfloat16),
                   preferred_element_type=jnp.float32)


if __name__ == "__main__":
    key = jax.random.PRNGKey(0)
    k_x0, k_x1, k_c0, k_c1, k_p = jax.random.split(key, 5)

    # small shapes
    B, C, Hg, Wg = 2, 4, 32, 32      # global views (NCHW)
    Hl, Wl = 16, 16                  # local crops (NCHW)
    feature_size, hidden_dim, bottleneck_dim, projection_dim = 128, 128, 128, 128

    x0 = jax.random.normal(k_x0, (B, C, Hg, Wg), jnp.float32)
    x1 = jax.random.normal(k_x1, (B, C, Hg, Wg), jnp.float32)
    xc = [jax.random.normal(k_c0, (B, C, Hl, Wl), jnp.float32),
          jax.random.normal(k_c1, (B, C, Hl, Wl), jnp.float32)]

    student_params = make_params(k_p, C, feature_size, hidden_dim,
                                 bottleneck_dim, projection_dim)
    # _init_teacher: teacher params copied from student
    teacher_params = jax.tree_util.tree_map(lambda a: a, student_params)

    # hw_chunk_cap=512: global views (HW=1024) get 2 chunks of 512 with 2 sub-blocks each
    # (exercises both the cross-chunk accumulation and the in-kernel sub-block loop);
    # local crops (HW=256) take a single full chunk.
    z_s, z_t, teacher_params_new = dino_forward(x0, x1, xc, student_params, teacher_params,
                                                momentum_teacher=0.996, hw_chunk_cap=512)
    for z in z_s + z_t:
        jax.block_until_ready(z)

    # shapes
    assert all(z.shape == (B, projection_dim) for z in z_s + z_t)

    # numerical check against plain-JAX reference
    refs_s = [_ref_view(x, student_params) for x in [x0, x1] + xc]
    refs_t = [_ref_view(x, teacher_params_new) for x in [x0, x1]]
    for z, r in zip(z_s, refs_s):
        assert jnp.allclose(z, r, atol=1e-2, rtol=1e-2), float(jnp.max(jnp.abs(z - r)))
    for z, r in zip(z_t, refs_t):
        assert jnp.allclose(z, r, atol=1e-2, rtol=1e-2), float(jnp.max(jnp.abs(z - r)))

    # teacher started equal to student -> momentum update keeps them (numerically) equal
    assert jnp.allclose(z_s[0], z_t[0], atol=5e-3)

    print("KERNEL_OK")
</pallas_src>

<mosaic_0001>
module attributes {stable_mosaic.version = 11 : i64} {
  func.func @_backbone_pool_kernel(%arg0: i32, %arg1: i32, %arg2: memref<1x4x512xf32, #tpu.memory_space<vmem>>, %arg3: memref<128x4xbf16, #tpu.memory_space<vmem>>, %arg4: memref<128x1xf32, #tpu.memory_space<vmem>>, %arg5: memref<1x128x1xbf16, #tpu.memory_space<vmem>>, %arg6: memref<128x256xf32, #tpu.memory_space<vmem>>) attributes {dimension_semantics = [#tpu.dimension_semantics<parallel>, #tpu.dimension_semantics<arbitrary>], iteration_bounds = array<i64: 4, 2>, scalar_prefetch = 0 : i64, scratch_operands = 1 : i64, tpu.core_type = #tpu.core_type<tc>, window_params = [{transform_indices = @transform_0, window_bounds = array<i64: 1, 4, 512>}, {pipeline_mode = #tpu.pipeline_mode<synchronous>, transform_indices = @transform_1, window_bounds = array<i64: 128, 4>}, {pipeline_mode = #tpu.pipeline_mode<synchronous>, transform_indices = @transform_2, window_bounds = array<i64: 128, 1>}, {transform_indices = @transform_3, window_bounds = array<i64: 1, 128, 1>}]} {
    %c0_i32 = arith.constant 0 : i32
    %0 = arith.cmpi eq, %arg1, %c0_i32 : i32
    %1 = arith.extui %0 : i1 to i32
    %c0_i32_0 = arith.constant 0 : i32
    %2 = arith.cmpi ne, %1, %c0_i32_0 : i32
    scf.if %2 {
      %cst_25 = arith.constant 0.000000e+00 : f32
      %37 = vector.broadcast %cst_25 : f32 to vector<128x256xf32>
      %c0_26 = arith.constant 0 : index
      %c0_27 = arith.constant 0 : index
      %38 = vector.load %arg6[%c0_26, %c0_27] : memref<128x256xf32, #tpu.memory_space<vmem>>, vector<128x256xf32>
      tpu.vector_store %arg6[%c0_26, %c0_27], %37 {strides = array<i32>} : memref<128x256xf32, #tpu.memory_space<vmem>>, vector<128x256xf32>,
    } else {
    }
    %c0 = arith.constant 0 : index
    %c0_1 = arith.constant 0 : index
    %3 = vector.load %arg4[%c0, %c0_1] : memref<128x1xf32, #tpu.memory_space<vmem>>, vector<128x1xf32>
    %4 = vector.shape_cast %3 : vector<128x1xf32> to vector<128x1xf32>
    %5 = vector.broadcast %4 : vector<128x1xf32> to vector<128x256xf32>
    %c0_i32_2 = arith.constant 0 : i32
    %c256_i32 = arith.constant 256 : i32
    %6 = arith.muli %c0_i32_2, %c256_i32 : i32
    %7 = tpu.assume_multiple %6, 256 : i32
    %c0_3 = arith.constant 0 : index
    %c0_4 = arith.constant 0 : index
    %8 = arith.index_cast %7 : i32 to index
    %9 = vector.load %arg2[%c0_3, %c0_4, %8] : memref<1x4x512xf32, #tpu.memory_space<vmem>>, vector<1x4x256xf32>
    %10 = vector.shape_cast %9 : vector<1x4x256xf32> to vector<4x256xf32>
    %11 = arith.truncf %10 : vector<4x256xf32> to vector<4x256xbf16>
    %c0_5 = arith.constant 0 : index
    %c0_6 = arith.constant 0 : index
    %12 = vector.load %arg3[%c0_5, %c0_6] : memref<128x4xbf16, #tpu.memory_space<vmem>>, vector<128x4xbf16>
    %cst = arith.constant dense<0.000000e+00> : vector<128x256xf32>
    %13 = tpu.matmul %12, %11, %cst {dimension_numbers = #tpu.dot_dimension_numbers<[1], [0], [0], [1], [0, 0, 1, 1], [], []>} : vector<128x4xbf16>, vector<4x256xbf16>, vector<128x256xf32> -> vector<128x256xf32>
    %14 = arith.addf %13, %5 : vector<128x256xf32>
    %cst_7 = arith.constant 0.000000e+00 : f32
    %15 = vector.broadcast %cst_7 : f32 to vector<128x256xf32>
    %16 = arith.maximumf %14, %15 : vector<128x256xf32>
    %c0_8 = arith.constant 0 : index
    %c0_9 = arith.constant 0 : index
    %17 = vector.load %arg6[%c0_8, %c0_9] : memref<128x256xf32, #tpu.memory_space<vmem>>, vector<128x256xf32>
    %18 = arith.addf %17, %16 : vector<128x256xf32>
    %c0_10 = arith.constant 0 : index
    %c0_11 = arith.constant 0 : index
    %19 = vector.load %arg6[%c0_10, %c0_11] : memref<128x256xf32, #tpu.memory_space<vmem>>, vector<128x256xf32>
    tpu.vector_store %arg6[%c0_10, %c0_11], %18 {strides = array<i32>} : memref<128x256xf32, #tpu.memory_space<vmem>>, vector<128x256xf32>,
    %c1_i32 = arith.constant 1 : i32
    %c256_i32_12 = arith.constant 256 : i32
    %20 = arith.muli %c1_i32, %c256_i32_12 : i32
    %21 = tpu.assume_multiple %20, 256 : i32
    %c0_13 = arith.constant 0 : index
    %c0_14 = arith.constant 0 : index
    %22 = arith.index_cast %21 : i32 to index
    %23 = vector.load %arg2[%c0_13, %c0_14, %22] : memref<1x4x512xf32, #tpu.memory_space<vmem>>, vector<1x4x256xf32>
    %24 = vector.shape_cast %23 : vector<1x4x256xf32> to vector<4x256xf32>
    %25 = arith.truncf %24 : vector<4x256xf32> to vector<4x256xbf16>
    %c0_15 = arith.constant 0 : index
    %c0_16 = arith.constant 0 : index
    %26 = vector.load %arg3[%c0_15, %c0_16] : memref<128x4xbf16, #tpu.memory_space<vmem>>, vector<128x4xbf16>
    %cst_17 = arith.constant dense<0.000000e+00> : vector<128x256xf32>
    %27 = tpu.matmul %26, %25, %cst_17 {dimension_numbers = #tpu.dot_dimension_numbers<[1], [0], [0], [1], [0, 0, 1, 1], [], []>} : vector<128x4xbf16>, vector<4x256xbf16>, vector<128x256xf32> -> vector<128x256xf32>
    %28 = arith.addf %27, %5 : vector<128x256xf32>
    %cst_18 = arith.constant 0.000000e+00 : f32
    %29 = vector.broadcast %cst_18 : f32 to vector<128x256xf32>
    %30 = arith.maximumf %28, %29 : vector<128x256xf32>
    %c0_19 = arith.constant 0 : index
    %c0_20 = arith.constant 0 : index
    %31 = vector.load %arg6[%c0_19, %c0_20] : memref<128x256xf32, #tpu.memory_space<vmem>>, vector<128x256xf32>
    %32 = arith.addf %31, %30 : vector<128x256xf32>
    %c0_21 = arith.constant 0 : index
    %c0_22 = arith.constant 0 : index
    %33 = vector.load %arg6[%c0_21, %c0_22] : memref<128x256xf32, #tpu.memory_space<vmem>>, vector<128x256xf32>
    tpu.vector_store %arg6[%c0_21, %c0_22], %32 {strides = array<i32>} : memref<128x256xf32, #tpu.memory_space<vmem>>, vector<128x256xf32>,
    %c2_i32 = arith.constant 2 : i32
    %c1_i32_23 = arith.constant 1 : i32
    %34 = arith.cmpi eq, %arg1, %c1_i32_23 : i32
    %35 = arith.extui %34 : i1 to i32
    %c0_i32_24 = arith.constant 0 : i32
    %36 = arith.cmpi ne, %35, %c0_i32_24 : i32
    scf.if %36 {
      %c0_25 = arith.constant 0 : index
      %c0_26 = arith.constant 0 : index
      %37 = vector.load %arg6[%c0_25, %c0_26] : memref<128x256xf32, #tpu.memory_space<vmem>>, vector<128x256xf32>
      %cst_27 = arith.constant dense<0.000000e+00> : vector<128xf32>
      %38 = vector.multi_reduction <add>, %37, %cst_27 [1] : vector<128x256xf32> to vector<128xf32>
      %39 = vector.shape_cast %38 : vector<128xf32> to vector<128x1xf32>
      %cst_28 = arith.constant 9.765625E-4 : f32
      %40 = vector.broadcast %cst_28 : f32 to vector<128x1xf32>
      %41 = arith.mulf %39, %40 : vector<128x1xf32>
      %42 = vector.shape_cast %41 : vector<128x1xf32> to vector<1x128x1xf32>
      %43 = arith.truncf %42 : vector<1x128x1xf32> to vector<1x128x1xbf16>
      %c0_29 = arith.constant 0 : index
      %c0_30 = arith.constant 0 : index
      %c0_31 = arith.constant 0 : index
      %44 = vector.load %arg5[%c0_29, %c0_30, %c0_31] : memref<1x128x1xbf16, #tpu.memory_space<vmem>>, vector<1x128x1xbf16>
      tpu.vector_store %arg5[%c0_29, %c0_30, %c0_31], %43 {strides = array<i32>} : memref<1x128x1xbf16, #tpu.memory_space<vmem>>, vector<1x128x1xbf16>,
    } else {
    }
    return
  }
  func.func @transform_0(%arg0: i32, %arg1: i32) -> (i32, i32, i32) {
    %c0_i32 = arith.constant 0 : i32
    %c0_i32_0 = arith.constant 0 : i32
    return %arg0, %c0_i32, %arg1 : i32, i32, i32
  }
  func.func @transform_1(%arg0: i32, %arg1: i32) -> (i32, i32) {
    %c0_i32 = arith.constant 0 : i32
    %c0_i32_0 = arith.constant 0 : i32
    %c0_i32_1 = arith.constant 0 : i32
    return %c0_i32, %c0_i32_0 : i32, i32
  }
  func.func @transform_2(%arg0: i32, %arg1: i32) -> (i32, i32) {
    %c0_i32 = arith.constant 0 : i32
    %c0_i32_0 = arith.constant 0 : i32
    %c0_i32_1 = arith.constant 0 : i32
    return %c0_i32, %c0_i32_0 : i32, i32
  }
  func.func @transform_3(%arg0: i32, %arg1: i32) -> (i32, i32, i32) {
    %c0_i32 = arith.constant 0 : i32
    %c0_i32_0 = arith.constant 0 : i32
    %c0_i32_1 = arith.constant 0 : i32
    return %arg0, %c0_i32, %c0_i32_0 : i32, i32, i32
  }
}

</mosaic_0001>

<llo_original>
// kernel: tpu_custom_call.1
$region0: #{tpu_custom_call.1}
  #allocation0 [shape = 'u32[]', space=smem, size = 0x4, offset = 0x4, fixed_abs, tag = 'smem constant byte address 0x4 - core index']
  #allocation1 [shape = 'u32[144,128]{1,0:T(1,128)}', space=vmem, size = 0x12000, scoped, tag = 'internal scratch']
  #allocation2 [shape = 'f32[128,256]{1,0:T(8,128)}', space=vmem, size = 0x20000, scoped, tag = 'scratch operand']
  %s0 = inlined_call_operand.vmem [shape: f32[4,4,1024], index: 0, kind: input, shape index: {}]
  %s1 = inlined_call_operand.vmem [shape: bf16[128,4], index: 1, kind: input, shape index: {}]
  %s2 = inlined_call_operand.vmem [shape: f32[128,1], index: 2, kind: input, shape index: {}]
  %s3 = inlined_call_operand.vmem [shape: bf16[4,128,1], index: 3, kind: output, shape index: {}]
  %s4 = sld [smem:[#allocation0]]
  $region53: #{tpu_custom_call.1} parent=0
    _
  %s6 = ssub.s32 1, %s4
  %s7 = scalar_select 0, %s6, %s4
  loop: start=0, step=1, limit=10
  $region2: #{tpu_custom_call.1} parent=0 // loop_pre_header
    _
  $region3: #{tpu_custom_call.1} parent=0 // loop_header
    %s9 = sphi 0, %s13
    %p10 = scmp.ge.s32.totalorder %s9, 10
    %s16 = sphi 0, %s28
    %s17 = sphi 0, %s24
    %s18 = sphi 0, %s16
    %s19 = sphi 0, %s17
    %s20 = sphi 0, %s18
    %s21 = sphi 0, %s19
    %s33 = sphi 0, %s35
    %s36 = sphi 0, %s33
    %s37 = sphi 0, %s36
    %s53 = sphi 0, %s37
    %s57 = sphi 0, %s57
    %s59 = sphi 0, %s57
    %s60 = sphi 0, %s59
    %s74 = sphi 0, %s60
    %s78 = sphi 0, %s78
    %s80 = sphi 0, %s78
    %s81 = sphi 0, %s80
    %s95 = sphi 0, %s81
    %s101 = sphi 0, %s103
    %s104 = sphi 0, %s101
    %s105 = sphi 0, %s104
    %s121 = sphi 0, %s105
  $region4: #{tpu_custom_call.1} parent=0 // loop_header_branch
    %12 = sbr.rel (%p10) target = $region8
  $region5: #{tpu_custom_call.1} parent=0 // loop_body
    %s14 = ssub.s32 %s9, 1
    %s15 = ssub.s32 %s9, 2
    %s22 = sadd.s32 1, %s17
    %p23 = scmp.ge.s32.totalorder %s22, 2
    %s24 = scalar_select %p23, 0, %s22
    %s25 = sadd.s32 1, %s16
    %s26 = scalar_select %p23, %s25, %s16
    %p27 = scmp.ge.s32.totalorder %s26, 4
    %s28 = scalar_select %p27, 0, %s26
    %s29 = ssub.s32 %s16, %s28
    %s30 = ssub.s32 %s17, %s24
    %s31 = sor.u32 %s29, %s30
    %p32 = scmp.eq.s32.totalorder %s31, 0
    %s34 = sadd.s32 %s33, 1
    %s35 = scalar_select %p32, %s33, %s34
    %p38 = pneg %p32
    %p39 = scmp.eq.s32.totalorder %s9, 7
    %p40 = por %p38, %p39
    %p41 = scmp.ne.s32.totalorder %s33, %s36
    %p42 = scmp.eq.s32.totalorder %s9, 0
    %p43 = por %p41, %p42
    %p44 = scmp.ne.s32.totalorder %s33, %s36
    %p45 = scmp.eq.s32.totalorder %s14, 7
    %p46 = por %p44, %p45
    %p47 = scmp.ne.s32.totalorder %s36, %s37
    %p48 = scmp.eq.s32.totalorder %s14, 0
    %p49 = por %p47, %p48
    %p50 = scmp.ne.s32.totalorder %s36, %s37
    %p51 = scmp.eq.s32.totalorder %s15, 7
    %p52 = por %p50, %p51
    %p54 = scmp.ne.s32.totalorder %s37, %s53
    %p55 = scmp.eq.s32.totalorder %s15, 0
    %p56 = por %p54, %p55
    %s58 = sadd.s32 %s57, 1
    %p61 = scmp.eq.s32.totalorder %s9, 7
    %p62 = scmp.ne.s32.totalorder %s57, %s59
    %p63 = scmp.eq.s32.totalorder %s9, 0
    %p64 = por %p62, %p63
    %p65 = scmp.ne.s32.totalorder %s57, %s59
    %p66 = scmp.eq.s32.totalorder %s14, 7
    %p67 = por %p65, %p66
    %p68 = scmp.ne.s32.totalorder %s59, %s60
    %p69 = scmp.eq.s32.totalorder %s14, 0
    %p70 = por %p68, %p69
    %p71 = scmp.ne.s32.totalorder %s59, %s60
    %p72 = scmp.eq.s32.totalorder %s15, 7
    %p73 = por %p71, %p72
    %p75 = scmp.ne.s32.totalorder %s60, %s74
    %p76 = scmp.eq.s32.totalorder %s15, 0
    %p77 = por %p75, %p76
    %s79 = sadd.s32 %s78, 1
    %p82 = scmp.eq.s32.totalorder %s9, 7
    %p83 = scmp.ne.s32.totalorder %s78, %s80
    %p84 = scmp.eq.s32.totalorder %s9, 0
    %p85 = por %p83, %p84
    %p86 = scmp.ne.s32.totalorder %s78, %s80
    %p87 = scmp.eq.s32.totalorder %s14, 7
    %p88 = por %p86, %p87
    %p89 = scmp.ne.s32.totalorder %s80, %s81
    %p90 = scmp.eq.s32.totalorder %s14, 0
    %p91 = por %p89, %p90
    %p92 = scmp.ne.s32.totalorder %s80, %s81
    %p93 = scmp.eq.s32.totalorder %s15, 7
    %p94 = por %p92, %p93
    %p96 = scmp.ne.s32.totalorder %s81, %s95
    %p97 = scmp.eq.s32.totalorder %s15, 0
    %p98 = por %p96, %p97
    %s99 = ssub.s32 %s16, %s28
    %p100 = scmp.eq.s32.totalorder %s99, 0
    %s102 = sadd.s32 %s101, 1
    %s103 = scalar_select %p100, %s101, %s102
    %p106 = pneg %p100
    %p107 = scmp.eq.s32.totalorder %s9, 7
    %p108 = por %p106, %p107
    %p109 = scmp.ne.s32.totalorder %s101, %s104
    %p110 = scmp.eq.s32.totalorder %s9, 0
    %p111 = por %p109, %p110
    %p112 = scmp.ne.s32.totalorder %s101, %s104
    %p113 = scmp.eq.s32.totalorder %s14, 7
    %p114 = por %p112, %p113
    %p115 = scmp.ne.s32.totalorder %s104, %s105
    %p116 = scmp.eq.s32.totalorder %s14, 0
    %p117 = por %p115, %p116
    %p118 = scmp.ne.s32.totalorder %s104, %s105
    %p119 = scmp.eq.s32.totalorder %s15, 7
    %p120 = por %p118, %p119
    %p122 = scmp.ne.s32.totalorder %s105, %s121
    %p123 = scmp.eq.s32.totalorder %s15, 0
    %p124 = por %p122, %p123
    %p125 = scmp.le.s32.totalorder 1, %s9
    %p126 = scmp.lt.s32.totalorder %s9, 9
    %p127 = pnand %p125, %p126
    %p128 = pneg %p127
    // Predicated region
    $region9: #{tpu_custom_call.1} parent=5 // pred_check
      _
    $region10: #{tpu_custom_call.1} parent=5 // pred_check_branch
      %130 = sbr.rel (%p127) target = $region12
    $region11: #{tpu_custom_call.1} parent=5 // pred_region
      %s131 = ssub.s32 %s9, 1
      // Predicated region
      $region13: #{tpu_custom_call.1} parent=11 // pred_check
        %p132 = pneg %p70
      $region14: #{tpu_custom_call.1} parent=11 // pred_check_branch
        %134 = sbr.rel (%p132) target = $region16
      $region15: #{tpu_custom_call.1} parent=11 // pred_region
        _
      $region16: #{tpu_custom_call.1} parent=11 // pred_fallthru
        _
      // Predicated region
      $region17: #{tpu_custom_call.1} parent=11 // pred_check
        %p135 = pneg %p91
      $region18: #{tpu_custom_call.1} parent=11 // pred_check_branch
        %137 = sbr.rel (%p135) target = $region20
      $region19: #{tpu_custom_call.1} parent=11 // pred_region
        _
      $region20: #{tpu_custom_call.1} parent=11 // pred_fallthru
        _
    $region12: #{tpu_custom_call.1} parent=5 // pred_fallthru
      _
    %p138 = scmp.lt.s32.totalorder %s9, 8
    // Predicated region
    $region21: #{tpu_custom_call.1} parent=5 // pred_check
      %p139 = pneg %p138
    $region22: #{tpu_custom_call.1} parent=5 // pred_check_branch
      %141 = sbr.rel (%p139) target = $region24
    $region23: #{tpu_custom_call.1} parent=5 // pred_region
      // Predicated region
      $region25: #{tpu_custom_call.1} parent=23 // pred_check
        %p142 = pneg %p43
      $region26: #{tpu_custom_call.1} parent=23 // pred_check_branch
        %144 = sbr.rel (%p142) target = $region28
      $region27: #{tpu_custom_call.1} parent=23 // pred_region
        %s145 = smul.u32 4, %s17
        %p146 = scmp.lt.s32.totalorder %s16, 3
        %s147 = scalar_select %p146, %s16, 3
        %p148 = scmp.lt.s32.totalorder %s145, 7
        %s149 = scalar_select %p148, %s145, 7
        %s150 = smul.addr %s147, 8
        %s151 = sadd.s32 %s149, %s150
        %s152 = smul.addr %s151, 4
        %s153 = scalar_lea.vmem %s0, %s152
        %s154 = smul.u32 4, %s17
      $region28: #{tpu_custom_call.1} parent=23 // pred_fallthru
        _
    $region24: #{tpu_custom_call.1} parent=5 // pred_fallthru
      _
    %p155 = scmp.le.s32.totalorder 1, %s9
    %p156 = scmp.lt.s32.totalorder %s9, 9
    %p157 = pnand %p155, %p156
    %p158 = pneg %p157
    // Predicated region
    $region29: #{tpu_custom_call.1} parent=5 // pred_check
      _
    $region30: #{tpu_custom_call.1} parent=5 // pred_check_branch
      %160 = sbr.rel (%p157) target = $region32
    $region31: #{tpu_custom_call.1} parent=5 // pred_region
      %s161 = ssub.s32 %s9, 1
      %s162 = smul.u32 4, %s19
      %p163 = scmp.lt.s32.totalorder %s18, 3
      %s164 = scalar_select %p163, %s18, 3
      %p165 = scmp.lt.s32.totalorder %s162, 7
      %s166 = scalar_select %p165, %s162, 7
      %s167 = smul.addr %s164, 8
      %s168 = sadd.s32 %s166, %s167
      %s169 = smul.addr %s168, 4
      %s170 = scalar_lea.vmem %s0, %s169
      %p171 = pneg %p49
      %p172 = pneg %p46
      %p173 = pneg %p70
      %p174 = pneg %p67
      %p175 = pneg %p91
      %p176 = pneg %p88
      %p177 = pneg %p117
      %p178 = pneg %p114
      %p179 = scmp.lt.s32.totalorder %s18, 3
      %s180 = scalar_select %p179, %s18, 3
      %s181 = smul.addr %s180, 16
      %s182 = smul.addr %s181, 4
      %s183 = scalar_lea.vmem %s3, %s182
      %s184 = smul.u32 4, %s19
      %p185 = scmp.lt.s32.totalorder %s18, 3
      %s186 = scalar_select %p185, %s18, 3
      %p187 = scmp.lt.s32.totalorder %s184, 7
      %s188 = scalar_select %p187, %s184, 7
      %s189 = smul.addr %s186, 8
      %s190 = sadd.s32 %s188, %s189
      %s191 = smul.addr %s190, 4
      %s192 = scalar_lea.vmem %s0, %s191
      %s193 = smul.u32 4, %s19
      %p194 = scmp.lt.s32.totalorder %s18, 3
      %s195 = scalar_select %p194, %s18, 3
      %s196 = smul.addr %s195, 16
      %s197 = smul.addr %s196, 4
      %s198 = scalar_lea.vmem %s3, %s197
      %p200 = scmp.eq.s32.totalorder %s19, 0
      // Predicated region
      $region33: #{tpu_custom_call.1} parent=31 // pred_check
        %p201 = pneg %p200
      $region34: #{tpu_custom_call.1} parent=31 // pred_check_branch
        %203 = sbr.rel (%p201) target = $region36
      $region35: #{tpu_custom_call.1} parent=31 // pred_region
        %204 = vst [vmem:[#allocation2] sm:$0xff] 0.0
        %205 = vst [vmem:[#allocation2 + $0x8] sm:$0xff] 0.0
        %206 = vst [vmem:[#allocation2 + $0x10] sm:$0xff] 0.0
        %207 = vst [vmem:[#allocation2 + $0x18] sm:$0xff] 0.0
        %208 = vst [vmem:[#allocation2 + $0x20] sm:$0xff] 0.0
        %209 = vst [vmem:[#allocation2 + $0x28] sm:$0xff] 0.0
        %210 = vst [vmem:[#allocation2 + $0x30] sm:$0xff] 0.0
        %211 = vst [vmem:[#allocation2 + $0x38] sm:$0xff] 0.0
        %212 = vst [vmem:[#allocation2 + $0x40] sm:$0xff] 0.0
        %213 = vst [vmem:[#allocation2 + $0x48] sm:$0xff] 0.0
        %214 = vst [vmem:[#allocation2 + $0x50] sm:$0xff] 0.0
        %215 = vst [vmem:[#allocation2 + $0x58] sm:$0xff] 0.0
        %216 = vst [vmem:[#allocation2 + $0x60] sm:$0xff] 0.0
        %217 = vst [vmem:[#allocation2 + $0x68] sm:$0xff] 0.0
        %218 = vst [vmem:[#allocation2 + $0x70] sm:$0xff] 0.0
        %219 = vst [vmem:[#allocation2 + $0x78] sm:$0xff] 0.0
        %220 = vst [vmem:[#allocation2 + $0x80] sm:$0xff] 0.0
        %221 = vst [vmem:[#allocation2 + $0x88] sm:$0xff] 0.0
        %222 = vst [vmem:[#allocation2 + $0x90] sm:$0xff] 0.0
        %223 = vst [vmem:[#allocation2 + $0x98] sm:$0xff] 0.0
        %224 = vst [vmem:[#allocation2 + $0xa0] sm:$0xff] 0.0
        %225 = vst [vmem:[#allocation2 + $0xa8] sm:$0xff] 0.0
        %226 = vst [vmem:[#allocation2 + $0xb0] sm:$0xff] 0.0
        %227 = vst [vmem:[#allocation2 + $0xb8] sm:$0xff] 0.0
        %228 = vst [vmem:[#allocation2 + $0xc0] sm:$0xff] 0.0
        %229 = vst [vmem:[#allocation2 + $0xc8] sm:$0xff] 0.0
        %230 = vst [vmem:[#allocation2 + $0xd0] sm:$0xff] 0.0
        %231 = vst [vmem:[#allocation2 + $0xd8] sm:$0xff] 0.0
        %232 = vst [vmem:[#allocation2 + $0xe0] sm:$0xff] 0.0
        %233 = vst [vmem:[#allocation2 + $0xe8] sm:$0xff] 0.0
        %234 = vst [vmem:[#allocation2 + $0xf0] sm:$0xff] 0.0
        %235 = vst [vmem:[#allocation2 + $0xf8] sm:$0xff] 0.0
      $region36: #{tpu_custom_call.1} parent=31 // pred_fallthru
        _
      %v236 = vld [vmem:[%s2] sm:$0xff]
      %v237 = vld [vmem:[%s2 + $0x8] sm:$0xff]
      %v238 = vld [vmem:[%s2 + $0x10] sm:$0xff]
      %v239 = vld [vmem:[%s2 + $0x18] sm:$0xff]
      %v240 = vld [vmem:[%s2 + $0x20] sm:$0xff]
      %v241 = vld [vmem:[%s2 + $0x28] sm:$0xff]
      %v242 = vld [vmem:[%s2 + $0x30] sm:$0xff]
      %v243 = vld [vmem:[%s2 + $0x38] sm:$0xff]
      %v244 = vld [vmem:[%s2 + $0x40] sm:$0xff]
      %v245 = vld [vmem:[%s2 + $0x48] sm:$0xff]
      %v246 = vld [vmem:[%s2 + $0x50] sm:$0xff]
      %v247 = vld [vmem:[%s2 + $0x58] sm:$0xff]
      %v248 = vld [vmem:[%s2 + $0x60] sm:$0xff]
      %v249 = vld [vmem:[%s2 + $0x68] sm:$0xff]
      %v250 = vld [vmem:[%s2 + $0x70] sm:$0xff]
      %v251 = vld [vmem:[%s2 + $0x78] sm:$0xff]
      %253 = vset.pattern.permute.xlu0 0
      %254 = vperm.xlu0 %253, %v236
      %v255 = vpop.permute.xlu0 %254
      %258 = vset.pattern.permute.xlu0 0
      %259 = vperm.xlu0 %258, %v237
      %v260 = vpop.permute.xlu0 %259
      %263 = vset.pattern.permute.xlu0 0
      %264 = vperm.xlu0 %263, %v238
      %v265 = vpop.permute.xlu0 %264
      %268 = vset.pattern.permute.xlu0 0
      %269 = vperm.xlu0 %268, %v239
      %v270 = vpop.permute.xlu0 %269
      %273 = vset.pattern.permute.xlu0 0
      %274 = vperm.xlu0 %273, %v240
      %v275 = vpop.permute.xlu0 %274
      %278 = vset.pattern.permute.xlu0 0
      %279 = vperm.xlu0 %278, %v241
      %v280 = vpop.permute.xlu0 %279
      %283 = vset.pattern.permute.xlu0 0
      %284 = vperm.xlu0 %283, %v242
      %v285 = vpop.permute.xlu0 %284
      %288 = vset.pattern.permute.xlu0 0
      %289 = vperm.xlu0 %288, %v243
      %v290 = vpop.permute.xlu0 %289
      %293 = vset.pattern.permute.xlu0 0
      %294 = vperm.xlu0 %293, %v244
      %v295 = vpop.permute.xlu0 %294
      %298 = vset.pattern.permute.xlu0 0
      %299 = vperm.xlu0 %298, %v245
      %v300 = vpop.permute.xlu0 %299
      %303 = vset.pattern.permute.xlu0 0
      %304 = vperm.xlu0 %303, %v246
      %v305 = vpop.permute.xlu0 %304
      %308 = vset.pattern.permute.xlu0 0
      %309 = vperm.xlu0 %308, %v247
      %v310 = vpop.permute.xlu0 %309
      %313 = vset.pattern.permute.xlu0 0
      %314 = vperm.xlu0 %313, %v248
      %v315 = vpop.permute.xlu0 %314
      %318 = vset.pattern.permute.xlu0 0
      %319 = vperm.xlu0 %318, %v249
      %v320 = vpop.permute.xlu0 %319
      %323 = vset.pattern.permute.xlu0 0
      %324 = vperm.xlu0 %323, %v250
      %v325 = vpop.permute.xlu0 %324
      %328 = vset.pattern.permute.xlu0 0
      %329 = vperm.xlu0 %328, %v251
      %v330 = vpop.permute.xlu0 %329
      %v332 = vld [vmem:[%s192] sm:$0xff]
      %v334 = vcombine.high %v332, %v332
      %v336 = vpack.c.bf16 %v332, %v332
      %v337 = vpack.c.bf16 %v334, %v334
      %v338 = vld [vmem:[%s1] sm:$0xf]
      %v339 = vld [vmem:[%s1 + $0x4] sm:$0xf]
      %v340 = vld [vmem:[%s1 + $0x8] sm:$0xf]
      %v341 = vld [vmem:[%s1 + $0xc] sm:$0xf]
      %v342 = vld [vmem:[%s1 + $0x10] sm:$0xf]
      %v343 = vld [vmem:[%s1 + $0x14] sm:$0xf]
      %v344 = vld [vmem:[%s1 + $0x18] sm:$0xf]
      %v345 = vld [vmem:[%s1 + $0x1c] sm:$0xf]
      %v346 = vld [vmem:[%s1 + $0x20] sm:$0xf]
      %v347 = vld [vmem:[%s1 + $0x24] sm:$0xf]
      %v348 = vld [vmem:[%s1 + $0x28] sm:$0xf]
      %v349 = vld [vmem:[%s1 + $0x2c] sm:$0xf]
      %v350 = vld [vmem:[%s1 + $0x30] sm:$0xf]
      %v351 = vld [vmem:[%s1 + $0x34] sm:$0xf]
      %v352 = vld [vmem:[%s1 + $0x38] sm:$0xf]
      %v353 = vld [vmem:[%s1 + $0x3c] sm:$0xf]
      %v370 = vunpack.c.l.b16 %v338
      %v371 = vunpack.c.l.b16 %v339
      %v372 = vunpack.c.l.b16 %v340
      %v373 = vunpack.c.l.b16 %v341
      %v374 = vunpack.c.l.b16 %v342
      %v375 = vunpack.c.l.b16 %v343
      %v376 = vunpack.c.l.b16 %v344
      %v377 = vunpack.c.l.b16 %v345
      %v378 = vunpack.c.l.b16 %v346
      %v379 = vunpack.c.l.b16 %v347
      %v380 = vunpack.c.l.b16 %v348
      %v381 = vunpack.c.l.b16 %v349
      %v382 = vunpack.c.l.b16 %v350
      %v383 = vunpack.c.l.b16 %v351
      %v384 = vunpack.c.l.b16 %v352
      %v385 = vunpack.c.l.b16 %v353
      %v386 = vpack.c.b16 %v371, %v370
      %v387 = vpack.c.b16 %v373, %v372
      %v388 = vpack.c.b16 %v375, %v374
      %v389 = vpack.c.b16 %v377, %v376
      %v390 = vpack.c.b16 %v379, %v378
      %v391 = vpack.c.b16 %v381, %v380
      %v392 = vpack.c.b16 %v383, %v382
      %v393 = vpack.c.b16 %v385, %v384
      %vm394 = vcmask 31744
      %v396 = vsel %vm394, %v386, 0
      %v399 = vsel %vm394, %v387, 0
      %v402 = vsel %vm394, %v388, 0
      %v405 = vsel %vm394, %v389, 0
      %v408 = vsel %vm394, %v390, 0
      %v411 = vsel %vm394, %v391, 0
      %v414 = vsel %vm394, %v392, 0
      %v417 = vsel %vm394, %v393, 0
      %vm419 = vcmask 1041408
      %v421 = vsel %vm419, %v336, 0
      %v424 = vsel %vm419, %v337, 0
      %426 = vmatprep.subr.bf16.mxu0 0
      %427 = vmatpush1.bf16.msra.mxu0 0
      %428 = vmatprep.subr.bf16.mxu0 0
      %429 = vmatpush1.bf16.msra.mxu0 0
      %430 = vmatprep.subr.bf16.mxu0 0
      %431 = vmatpush1.bf16.msra.mxu0 0
      %432 = vmatprep.subr.bf16.mxu0 0
      %433 = vmatpush1.bf16.msra.mxu0 0
      %434 = vmatprep.subr.bf16.mxu0 0
      %435 = vmatpush1.bf16.msra.mxu0 0
      %436 = vmatprep.subr.bf16.mxu0 0
      %437 = vmatpush1.bf16.msra.mxu0 0
      %438 = vmatprep.subr.bf16.mxu0 0
      %439 = vmatpush1.bf16.msra.mxu0 0
      %440 = vmatprep.subr.bf16.mxu0 %v424
      %441 = vmatpush1.bf16.msra.mxu0 %v421
      %442 = vmatprep.subr.bf16.mxu0 0
      %443 = vmatpush2.bf16.msra.mxu0 0
      %444 = vmatprep.subr.bf16.mxu0 0
      %445 = vmatpush2.bf16.msra.mxu0 0
      %446 = vmatprep.subr.bf16.mxu0 0
      %447 = vmatpush2.bf16.msra.mxu0 0
      %448 = vmatprep.subr.bf16.mxu0 0
      %449 = vmatpush2.bf16.msra.mxu0 0
      %450 = vmatprep.subr.bf16.mxu0 0
      %451 = vmatpush2.bf16.msra.mxu0 0
      %452 = vmatprep.subr.bf16.mxu0 0
      %453 = vmatpush2.bf16.msra.mxu0 0
      %454 = vmatprep.subr.bf16.mxu0 0
      %455 = vmatpush2.bf16.msra.mxu0 0
      %456 = vmatprep.subr.bf16.mxu0 0
      %457 = vmatpush2.bf16.msra.mxu0 0
      %458 = vmatprep.mubr.bf16.mxu0 0
      %459 = vmatmul.mubr.bf16.gmra.mxu0 %v396
      %v460 = vpop.f32.mrf.mxu0
      %v461 = vadd.f32 %v255, %v460
      %v462 = vpop.f32.mrf.mxu0
      %v463 = vadd.f32 %v255, %v462
      %v464 = vpop.f32.mrf.mxu0
      %v465 = vadd.f32 %v260, %v464
      %v466 = vpop.f32.mrf.mxu0
      %v467 = vadd.f32 %v260, %v466
      %468 = vmatprep.mubr.bf16.mxu0 0
      %469 = vmatmul.mubr.bf16.gmra.mxu0 %v399
      %v470 = vpop.f32.mrf.mxu0
      %v471 = vadd.f32 %v265, %v470
      %v472 = vpop.f32.mrf.mxu0
      %v473 = vadd.f32 %v265, %v472
      %v474 = vpop.f32.mrf.mxu0
      %v475 = vadd.f32 %v270, %v474
      %v476 = vpop.f32.mrf.mxu0
      %v477 = vadd.f32 %v270, %v476
      %478 = vmatprep.mubr.bf16.mxu0 0
      %479 = vmatmul.mubr.bf16.gmra.mxu0 %v402
      %v480 = vpop.f32.mrf.mxu0
      %v481 = vadd.f32 %v275, %v480
      %v482 = vpop.f32.mrf.mxu0
      %v483 = vadd.f32 %v275, %v482
      %v484 = vpop.f32.mrf.mxu0
      %v485 = vadd.f32 %v280, %v484
      %v486 = vpop.f32.mrf.mxu0
      %v487 = vadd.f32 %v280, %v486
      %488 = vmatprep.mubr.bf16.mxu0 0
      %489 = vmatmul.mubr.bf16.gmra.mxu0 %v405
      %v490 = vpop.f32.mrf.mxu0
      %v491 = vadd.f32 %v285, %v490
      %v492 = vpop.f32.mrf.mxu0
      %v493 = vadd.f32 %v285, %v492
      %v494 = vpop.f32.mrf.mxu0
      %v495 = vadd.f32 %v290, %v494
      %v496 = vpop.f32.mrf.mxu0
      %v497 = vadd.f32 %v290, %v496
      %498 = vmatprep.mubr.bf16.mxu0 0
      %499 = vmatmul.mubr.bf16.gmra.mxu0 %v408
      %v500 = vpop.f32.mrf.mxu0
      %v501 = vadd.f32 %v295, %v500
      %v502 = vpop.f32.mrf.mxu0
      %v503 = vadd.f32 %v295, %v502
      %v504 = vpop.f32.mrf.mxu0
      %v505 = vadd.f32 %v300, %v504
      %v506 = vpop.f32.mrf.mxu0
      %v507 = vadd.f32 %v300, %v506
      %508 = vmatprep.mubr.bf16.mxu0 0
      %509 = vmatmul.mubr.bf16.gmra.mxu0 %v411
      %v510 = vpop.f32.mrf.mxu0
      %v511 = vadd.f32 %v305, %v510
      %v512 = vpop.f32.mrf.mxu0
      %v513 = vadd.f32 %v305, %v512
      %v514 = vpop.f32.mrf.mxu0
      %v515 = vadd.f32 %v310, %v514
      %v516 = vpop.f32.mrf.mxu0
      %v517 = vadd.f32 %v310, %v516
      %518 = vmatprep.mubr.bf16.mxu0 0
      %519 = vmatmul.mubr.bf16.gmra.mxu0 %v414
      %v520 = vpop.f32.mrf.mxu0
      %v521 = vadd.f32 %v315, %v520
      %v522 = vpop.f32.mrf.mxu0
      %v523 = vadd.f32 %v315, %v522
      %v524 = vpop.f32.mrf.mxu0
      %v525 = vadd.f32 %v320, %v524
      %v526 = vpop.f32.mrf.mxu0
      %v527 = vadd.f32 %v320, %v526
      %528 = vmatprep.mubr.bf16.mxu0 0
      %529 = vmatmul.mubr.bf16.gmra.mxu0 %v417
      %v530 = vpop.f32.mrf.mxu0
      %v531 = vadd.f32 %v325, %v530
      %v532 = vpop.f32.mrf.mxu0
      %v533 = vadd.f32 %v325, %v532
      %v534 = vpop.f32.mrf.mxu0
      %v535 = vadd.f32 %v330, %v534
      %v536 = vpop.f32.mrf.mxu0
      %v537 = vadd.f32 %v330, %v536
      %538 = vdwg.mxu0
      %v539 = vmax.f32 %v461, 0.0
      %v540 = vmax.f32 %v463, 0.0
      %v541 = vmax.f32 %v465, 0.0
      %v542 = vmax.f32 %v467, 0.0
      %v543 = vmax.f32 %v471, 0.0
      %v544 = vmax.f32 %v473, 0.0
      %v545 = vmax.f32 %v475, 0.0
      %v546 = vmax.f32 %v477, 0.0
      %v547 = vmax.f32 %v481, 0.0
      %v548 = vmax.f32 %v483, 0.0
      %v549 = vmax.f32 %v485, 0.0
      %v550 = vmax.f32 %v487, 0.0
      %v551 = vmax.f32 %v491, 0.0
      %v552 = vmax.f32 %v493, 0.0
      %v553 = vmax.f32 %v495, 0.0
      %v554 = vmax.f32 %v497, 0.0
      %v555 = vmax.f32 %v501, 0.0
      %v556 = vmax.f32 %v503, 0.0
      %v557 = vmax.f32 %v505, 0.0
      %v558 = vmax.f32 %v507, 0.0
      %v559 = vmax.f32 %v511, 0.0
      %v560 = vmax.f32 %v513, 0.0
      %v561 = vmax.f32 %v515, 0.0
      %v562 = vmax.f32 %v517, 0.0
      %v563 = vmax.f32 %v521, 0.0
      %v564 = vmax.f32 %v523, 0.0
      %v565 = vmax.f32 %v525, 0.0
      %v566 = vmax.f32 %v527, 0.0
      %v567 = vmax.f32 %v531, 0.0
      %v568 = vmax.f32 %v533, 0.0
      %v569 = vmax.f32 %v535, 0.0
      %v570 = vmax.f32 %v537, 0.0
      %v571 = vld [vmem:[#allocation2] sm:$0xff]
      %v572 = vld [vmem:[#allocation2 + $0x8] sm:$0xff]
      %v573 = vld [vmem:[#allocation2 + $0x10] sm:$0xff]
      %v574 = vld [vmem:[#allocation2 + $0x18] sm:$0xff]
      %v575 = vld [vmem:[#allocation2 + $0x20] sm:$0xff]
      %v576 = vld [vmem:[#allocation2 + $0x28] sm:$0xff]
      %v577 = vld [vmem:[#allocation2 + $0x30] sm:$0xff]
      %v578 = vld [vmem:[#allocation2 + $0x38] sm:$0xff]
      %v579 = vld [vmem:[#allocation2 + $0x40] sm:$0xff]
      %v580 = vld [vmem:[#allocation2 + $0x48] sm:$0xff]
      %v581 = vld [vmem:[#allocation2 + $0x50] sm:$0xff]
      %v582 = vld [vmem:[#allocation2 + $0x58] sm:$0xff]
      %v583 = vld [vmem:[#allocation2 + $0x60] sm:$0xff]
      %v584 = vld [vmem:[#allocation2 + $0x68] sm:$0xff]
      %v585 = vld [vmem:[#allocation2 + $0x70] sm:$0xff]
      %v586 = vld [vmem:[#allocation2 + $0x78] sm:$0xff]
      %v587 = vld [vmem:[#allocation2 + $0x80] sm:$0xff]
      %v588 = vld [vmem:[#allocation2 + $0x88] sm:$0xff]
      %v589 = vld [vmem:[#allocation2 + $0x90] sm:$0xff]
      %v590 = vld [vmem:[#allocation2 + $0x98] sm:$0xff]
      %v591 = vld [vmem:[#allocation2 + $0xa0] sm:$0xff]
      %v592 = vld [vmem:[#allocation2 + $0xa8] sm:$0xff]
      %v593 = vld [vmem:[#allocation2 + $0xb0] sm:$0xff]
      %v594 = vld [vmem:[#allocation2 + $0xb8] sm:$0xff]
      %v595 = vld [vmem:[#allocation2 + $0xc0] sm:$0xff]
      %v596 = vld [vmem:[#allocation2 + $0xc8] sm:$0xff]
      %v597 = vld [vmem:[#allocation2 + $0xd0] sm:$0xff]
      %v598 = vld [vmem:[#allocation2 + $0xd8] sm:$0xff]
      %v599 = vld [vmem:[#allocation2 + $0xe0] sm:$0xff]
      %v600 = vld [vmem:[#allocation2 + $0xe8] sm:$0xff]
      %v601 = vld [vmem:[#allocation2 + $0xf0] sm:$0xff]
      %v602 = vld [vmem:[#allocation2 + $0xf8] sm:$0xff]
      %v603 = vadd.f32 %v571, %v539
      %v604 = vadd.f32 %v572, %v540
      %v605 = vadd.f32 %v573, %v541
      %v606 = vadd.f32 %v574, %v542
      %v607 = vadd.f32 %v575, %v543
      %v608 = vadd.f32 %v576, %v544
      %v609 = vadd.f32 %v577, %v545
      %v610 = vadd.f32 %v578, %v546
      %v611 = vadd.f32 %v579, %v547
      %v612 = vadd.f32 %v580, %v548
      %v613 = vadd.f32 %v581, %v549
      %v614 = vadd.f32 %v582, %v550
      %v615 = vadd.f32 %v583, %v551
      %v616 = vadd.f32 %v584, %v552
      %v617 = vadd.f32 %v585, %v553
      %v618 = vadd.f32 %v586, %v554
      %v619 = vadd.f32 %v587, %v555
      %v620 = vadd.f32 %v588, %v556
      %v621 = vadd.f32 %v589, %v557
      %v622 = vadd.f32 %v590, %v558
      %v623 = vadd.f32 %v591, %v559
      %v624 = vadd.f32 %v592, %v560
      %v625 = vadd.f32 %v593, %v561
      %v626 = vadd.f32 %v594, %v562
      %v627 = vadd.f32 %v595, %v563
      %v628 = vadd.f32 %v596, %v564
      %v629 = vadd.f32 %v597, %v565
      %v630 = vadd.f32 %v598, %v566
      %v631 = vadd.f32 %v599, %v567
      %v632 = vadd.f32 %v600, %v568
      %v633 = vadd.f32 %v601, %v569
      %v634 = vadd.f32 %v602, %v570
      %635 = vst [vmem:[#allocation2] sm:$0xff] %v603
      %636 = vst [vmem:[#allocation2 + $0x8] sm:$0xff] %v604
      %637 = vst [vmem:[#allocation2 + $0x10] sm:$0xff] %v605
      %638 = vst [vmem:[#allocation2 + $0x18] sm:$0xff] %v606
      %639 = vst [vmem:[#allocation2 + $0x20] sm:$0xff] %v607
      %640 = vst [vmem:[#allocation2 + $0x28] sm:$0xff] %v608
      %641 = vst [vmem:[#allocation2 + $0x30] sm:$0xff] %v609
      %642 = vst [vmem:[#allocation2 + $0x38] sm:$0xff] %v610
      %643 = vst [vmem:[#allocation2 + $0x40] sm:$0xff] %v611
      %644 = vst [vmem:[#allocation2 + $0x48] sm:$0xff] %v612
      %645 = vst [vmem:[#allocation2 + $0x50] sm:$0xff] %v613
      %646 = vst [vmem:[#allocation2 + $0x58] sm:$0xff] %v614
      %647 = vst [vmem:[#allocation2 + $0x60] sm:$0xff] %v615
      %648 = vst [vmem:[#allocation2 + $0x68] sm:$0xff] %v616
      %649 = vst [vmem:[#allocation2 + $0x70] sm:$0xff] %v617
      %650 = vst [vmem:[#allocation2 + $0x78] sm:$0xff] %v618
      %651 = vst [vmem:[#allocation2 + $0x80] sm:$0xff] %v619
      %652 = vst [vmem:[#allocation2 + $0x88] sm:$0xff] %v620
      %653 = vst [vmem:[#allocation2 + $0x90] sm:$0xff] %v621
      %654 = vst [vmem:[#allocation2 + $0x98] sm:$0xff] %v622
      %655 = vst [vmem:[#allocation2 + $0xa0] sm:$0xff] %v623
      %656 = vst [vmem:[#allocation2 + $0xa8] sm:$0xff] %v624
      %657 = vst [vmem:[#allocation2 + $0xb0] sm:$0xff] %v625
      %658 = vst [vmem:[#allocation2 + $0xb8] sm:$0xff] %v626
      %659 = vst [vmem:[#allocation2 + $0xc0] sm:$0xff] %v627
      %660 = vst [vmem:[#allocation2 + $0xc8] sm:$0xff] %v628
      %661 = vst [vmem:[#allocation2 + $0xd0] sm:$0xff] %v629
      %662 = vst [vmem:[#allocation2 + $0xd8] sm:$0xff] %v630
      %663 = vst [vmem:[#allocation2 + $0xe0] sm:$0xff] %v631
      %664 = vst [vmem:[#allocation2 + $0xe8] sm:$0xff] %v632
      %665 = vst [vmem:[#allocation2 + $0xf0] sm:$0xff] %v633
      %666 = vst [vmem:[#allocation2 + $0xf8] sm:$0xff] %v634
      %s667 = scalar_lea.vmem %s192, 8
      %v668 = vld [vmem:[%s667] sm:$0xff]
      %v670 = vcombine.high %v668, %v668
      %v672 = vpack.c.bf16 %v668, %v668
      %v673 = vpack.c.bf16 %v670, %v670
      %v674 = vld [vmem:[%s1] sm:$0xf]
      %v675 = vld [vmem:[%s1 + $0x4] sm:$0xf]
      %v676 = vld [vmem:[%s1 + $0x8] sm:$0xf]
      %v677 = vld [vmem:[%s1 + $0xc] sm:$0xf]
      %v678 = vld [vmem:[%s1 + $0x10] sm:$0xf]
      %v679 = vld [vmem:[%s1 + $0x14] sm:$0xf]
      %v680 = vld [vmem:[%s1 + $0x18] sm:$0xf]
      %v681 = vld [vmem:[%s1 + $0x1c] sm:$0xf]
      %v682 = vld [vmem:[%s1 + $0x20] sm:$0xf]
      %v683 = vld [vmem:[%s1 + $0x24] sm:$0xf]
      %v684 = vld [vmem:[%s1 + $0x28] sm:$0xf]
      %v685 = vld [vmem:[%s1 + $0x2c] sm:$0xf]
      %v686 = vld [vmem:[%s1 + $0x30] sm:$0xf]
      %v687 = vld [vmem:[%s1 + $0x34] sm:$0xf]
      %v688 = vld [vmem:[%s1 + $0x38] sm:$0xf]
      %v689 = vld [vmem:[%s1 + $0x3c] sm:$0xf]
      %v706 = vunpack.c.l.b16 %v674
      %v707 = vunpack.c.l.b16 %v675
      %v708 = vunpack.c.l.b16 %v676
      %v709 = vunpack.c.l.b16 %v677
      %v710 = vunpack.c.l.b16 %v678
      %v711 = vunpack.c.l.b16 %v679
      %v712 = vunpack.c.l.b16 %v680
      %v713 = vunpack.c.l.b16 %v681
      %v714 = vunpack.c.l.b16 %v682
      %v715 = vunpack.c.l.b16 %v683
      %v716 = vunpack.c.l.b16 %v684
      %v717 = vunpack.c.l.b16 %v685
      %v718 = vunpack.c.l.b16 %v686
      %v719 = vunpack.c.l.b16 %v687
      %v720 = vunpack.c.l.b16 %v688
      %v721 = vunpack.c.l.b16 %v689
      %v722 = vpack.c.b16 %v707, %v706
      %v723 = vpack.c.b16 %v709, %v708
      %v724 = vpack.c.b16 %v711, %v710
      %v725 = vpack.c.b16 %v713, %v712
      %v726 = vpack.c.b16 %v715, %v714
      %v727 = vpack.c.b16 %v717, %v716
      %v728 = vpack.c.b16 %v719, %v718
      %v729 = vpack.c.b16 %v721, %v720
      %v731 = vsel %vm394, %v722, 0
      %v734 = vsel %vm394, %v723, 0
      %v737 = vsel %vm394, %v724, 0
      %v740 = vsel %vm394, %v725, 0
      %v743 = vsel %vm394, %v726, 0
      %v746 = vsel %vm394, %v727, 0
      %v749 = vsel %vm394, %v728, 0
      %v752 = vsel %vm394, %v729, 0
      %v755 = vsel %vm419, %v672, 0
      %v758 = vsel %vm419, %v673, 0
      %760 = vmatprep.subr.bf16.mxu0 0
      %761 = vmatpush1.bf16.msra.mxu0 0
      %762 = vmatprep.subr.bf16.mxu0 0
      %763 = vmatpush1.bf16.msra.mxu0 0
      %764 = vmatprep.subr.bf16.mxu0 0
      %765 = vmatpush1.bf16.msra.mxu0 0
      %766 = vmatprep.subr.bf16.mxu0 0
      %767 = vmatpush1.bf16.msra.mxu0 0
      %768 = vmatprep.subr.bf16.mxu0 0
      %769 = vmatpush1.bf16.msra.mxu0 0
      %770 = vmatprep.subr.bf16.mxu0 0
      %771 = vmatpush1.bf16.msra.mxu0 0
      %772 = vmatprep.subr.bf16.mxu0 0
      %773 = vmatpush1.bf16.msra.mxu0 0
      %774 = vmatprep.subr.bf16.mxu0 %v758
      %775 = vmatpush1.bf16.msra.mxu0 %v755
      %776 = vmatprep.subr.bf16.mxu0 0
      %777 = vmatpush2.bf16.msra.mxu0 0
      %778 = vmatprep.subr.bf16.mxu0 0
      %779 = vmatpush2.bf16.msra.mxu0 0
      %780 = vmatprep.subr.bf16.mxu0 0
      %781 = vmatpush2.bf16.msra.mxu0 0
      %782 = vmatprep.subr.bf16.mxu0 0
      %783 = vmatpush2.bf16.msra.mxu0 0
      %784 = vmatprep.subr.bf16.mxu0 0
      %785 = vmatpush2.bf16.msra.mxu0 0
      %786 = vmatprep.subr.bf16.mxu0 0
      %787 = vmatpush2.bf16.msra.mxu0 0
      %788 = vmatprep.subr.bf16.mxu0 0
      %789 = vmatpush2.bf16.msra.mxu0 0
      %790 = vmatprep.subr.bf16.mxu0 0
      %791 = vmatpush2.bf16.msra.mxu0 0
      %792 = vmatprep.mubr.bf16.mxu0 0
      %793 = vmatmul.mubr.bf16.gmra.mxu0 %v731
      %v794 = vpop.f32.mrf.mxu0
      %v795 = vadd.f32 %v255, %v794
      %v796 = vpop.f32.mrf.mxu0
      %v797 = vadd.f32 %v255, %v796
      %v798 = vpop.f32.mrf.mxu0
      %v799 = vadd.f32 %v260, %v798
      %v800 = vpop.f32.mrf.mxu0
      %v801 = vadd.f32 %v260, %v800
      %802 = vmatprep.mubr.bf16.mxu0 0
      %803 = vmatmul.mubr.bf16.gmra.mxu0 %v734
      %v804 = vpop.f32.mrf.mxu0
      %v805 = vadd.f32 %v265, %v804
      %v806 = vpop.f32.mrf.mxu0
      %v807 = vadd.f32 %v265, %v806
      %v808 = vpop.f32.mrf.mxu0
      %v809 = vadd.f32 %v270, %v808
      %v810 = vpop.f32.mrf.mxu0
      %v811 = vadd.f32 %v270, %v810
      %812 = vmatprep.mubr.bf16.mxu0 0
      %813 = vmatmul.mubr.bf16.gmra.mxu0 %v737
      %v814 = vpop.f32.mrf.mxu0
      %v815 = vadd.f32 %v275, %v814
      %v816 = vpop.f32.mrf.mxu0
      %v817 = vadd.f32 %v275, %v816
      %v818 = vpop.f32.mrf.mxu0
      %v819 = vadd.f32 %v280, %v818
      %v820 = vpop.f32.mrf.mxu0
      %v821 = vadd.f32 %v280, %v820
      %822 = vmatprep.mubr.bf16.mxu0 0
      %823 = vmatmul.mubr.bf16.gmra.mxu0 %v740
      %v824 = vpop.f32.mrf.mxu0
      %v825 = vadd.f32 %v285, %v824
      %v826 = vpop.f32.mrf.mxu0
      %v827 = vadd.f32 %v285, %v826
      %v828 = vpop.f32.mrf.mxu0
      %v829 = vadd.f32 %v290, %v828
      %v830 = vpop.f32.mrf.mxu0
      %v831 = vadd.f32 %v290, %v830
      %832 = vmatprep.mubr.bf16.mxu0 0
      %833 = vmatmul.mubr.bf16.gmra.mxu0 %v743
      %v834 = vpop.f32.mrf.mxu0
      %v835 = vadd.f32 %v295, %v834
      %v836 = vpop.f32.mrf.mxu0
      %v837 = vadd.f32 %v295, %v836
      %v838 = vpop.f32.mrf.mxu0
      %v839 = vadd.f32 %v300, %v838
      %v840 = vpop.f32.mrf.mxu0
      %v841 = vadd.f32 %v300, %v840
      %842 = vmatprep.mubr.bf16.mxu0 0
      %843 = vmatmul.mubr.bf16.gmra.mxu0 %v746
      %v844 = vpop.f32.mrf.mxu0
      %v845 = vadd.f32 %v305, %v844
      %v846 = vpop.f32.mrf.mxu0
      %v847 = vadd.f32 %v305, %v846
      %v848 = vpop.f32.mrf.mxu0
      %v849 = vadd.f32 %v310, %v848
      %v850 = vpop.f32.mrf.mxu0
      %v851 = vadd.f32 %v310, %v850
      %852 = vmatprep.mubr.bf16.mxu0 0
      %853 = vmatmul.mubr.bf16.gmra.mxu0 %v749
      %v854 = vpop.f32.mrf.mxu0
      %v855 = vadd.f32 %v315, %v854
      %v856 = vpop.f32.mrf.mxu0
      %v857 = vadd.f32 %v315, %v856
      %v858 = vpop.f32.mrf.mxu0
      %v859 = vadd.f32 %v320, %v858
      %v860 = vpop.f32.mrf.mxu0
      %v861 = vadd.f32 %v320, %v860
      %862 = vmatprep.mubr.bf16.mxu0 0
      %863 = vmatmul.mubr.bf16.gmra.mxu0 %v752
      %v864 = vpop.f32.mrf.mxu0
      %v865 = vadd.f32 %v325, %v864
      %v866 = vpop.f32.mrf.mxu0
      %v867 = vadd.f32 %v325, %v866
      %v868 = vpop.f32.mrf.mxu0
      %v869 = vadd.f32 %v330, %v868
      %v870 = vpop.f32.mrf.mxu0
      %v871 = vadd.f32 %v330, %v870
      %872 = vdwg.mxu0
      %v873 = vmax.f32 %v795, 0.0
      %v874 = vmax.f32 %v797, 0.0
      %v875 = vmax.f32 %v799, 0.0
      %v876 = vmax.f32 %v801, 0.0
      %v877 = vmax.f32 %v805, 0.0
      %v878 = vmax.f32 %v807, 0.0
      %v879 = vmax.f32 %v809, 0.0
      %v880 = vmax.f32 %v811, 0.0
      %v881 = vmax.f32 %v815, 0.0
      %v882 = vmax.f32 %v817, 0.0
      %v883 = vmax.f32 %v819, 0.0
      %v884 = vmax.f32 %v821, 0.0
      %v885 = vmax.f32 %v825, 0.0
      %v886 = vmax.f32 %v827, 0.0
      %v887 = vmax.f32 %v829, 0.0
      %v888 = vmax.f32 %v831, 0.0
      %v889 = vmax.f32 %v835, 0.0
      %v890 = vmax.f32 %v837, 0.0
      %v891 = vmax.f32 %v839, 0.0
      %v892 = vmax.f32 %v841, 0.0
      %v893 = vmax.f32 %v845, 0.0
      %v894 = vmax.f32 %v847, 0.0
      %v895 = vmax.f32 %v849, 0.0
      %v896 = vmax.f32 %v851, 0.0
      %v897 = vmax.f32 %v855, 0.0
      %v898 = vmax.f32 %v857, 0.0
      %v899 = vmax.f32 %v859, 0.0
      %v900 = vmax.f32 %v861, 0.0
      %v901 = vmax.f32 %v865, 0.0
      %v902 = vmax.f32 %v867, 0.0
      %v903 = vmax.f32 %v869, 0.0
      %v904 = vmax.f32 %v871, 0.0
      %v905 = vld [vmem:[#allocation2] sm:$0xff]
      %v906 = vld [vmem:[#allocation2 + $0x8] sm:$0xff]
      %v907 = vld [vmem:[#allocation2 + $0x10] sm:$0xff]
      %v908 = vld [vmem:[#allocation2 + $0x18] sm:$0xff]
      %v909 = vld [vmem:[#allocation2 + $0x20] sm:$0xff]
      %v910 = vld [vmem:[#allocation2 + $0x28] sm:$0xff]
      %v911 = vld [vmem:[#allocation2 + $0x30] sm:$0xff]
      %v912 = vld [vmem:[#allocation2 + $0x38] sm:$0xff]
      %v913 = vld [vmem:[#allocation2 + $0x40] sm:$0xff]
      %v914 = vld [vmem:[#allocation2 + $0x48] sm:$0xff]
      %v915 = vld [vmem:[#allocation2 + $0x50] sm:$0xff]
      %v916 = vld [vmem:[#allocation2 + $0x58] sm:$0xff]
      %v917 = vld [vmem:[#allocation2 + $0x60] sm:$0xff]
      %v918 = vld [vmem:[#allocation2 + $0x68] sm:$0xff]
      %v919 = vld [vmem:[#allocation2 + $0x70] sm:$0xff]
      %v920 = vld [vmem:[#allocation2 + $0x78] sm:$0xff]
      %v921 = vld [vmem:[#allocation2 + $0x80] sm:$0xff]
      %v922 = vld [vmem:[#allocation2 + $0x88] sm:$0xff]
      %v923 = vld [vmem:[#allocation2 + $0x90] sm:$0xff]
      %v924 = vld [vmem:[#allocation2 + $0x98] sm:$0xff]
      %v925 = vld [vmem:[#allocation2 + $0xa0] sm:$0xff]
      %v926 = vld [vmem:[#allocation2 + $0xa8] sm:$0xff]
      %v927 = vld [vmem:[#allocation2 + $0xb0] sm:$0xff]
      %v928 = vld [vmem:[#allocation2 + $0xb8] sm:$0xff]
      %v929 = vld [vmem:[#allocation2 + $0xc0] sm:$0xff]
      %v930 = vld [vmem:[#allocation2 + $0xc8] sm:$0xff]
      %v931 = vld [vmem:[#allocation2 + $0xd0] sm:$0xff]
      %v932 = vld [vmem:[#allocation2 + $0xd8] sm:$0xff]
      %v933 = vld [vmem:[#allocation2 + $0xe0] sm:$0xff]
      %v934 = vld [vmem:[#allocation2 + $0xe8] sm:$0xff]
      %v935 = vld [vmem:[#allocation2 + $0xf0] sm:$0xff]
      %v936 = vld [vmem:[#allocation2 + $0xf8] sm:$0xff]
      %v937 = vadd.f32 %v905, %v873
      %v938 = vadd.f32 %v906, %v874
      %v939 = vadd.f32 %v907, %v875
      %v940 = vadd.f32 %v908, %v876
      %v941 = vadd.f32 %v909, %v877
      %v942 = vadd.f32 %v910, %v878
      %v943 = vadd.f32 %v911, %v879
      %v944 = vadd.f32 %v912, %v880
      %v945 = vadd.f32 %v913, %v881
      %v946 = vadd.f32 %v914, %v882
      %v947 = vadd.f32 %v915, %v883
      %v948 = vadd.f32 %v916, %v884
      %v949 = vadd.f32 %v917, %v885
      %v950 = vadd.f32 %v918, %v886
      %v951 = vadd.f32 %v919, %v887
      %v952 = vadd.f32 %v920, %v888
      %v953 = vadd.f32 %v921, %v889
      %v954 = vadd.f32 %v922, %v890
      %v955 = vadd.f32 %v923, %v891
      %v956 = vadd.f32 %v924, %v892
      %v957 = vadd.f32 %v925, %v893
      %v958 = vadd.f32 %v926, %v894
      %v959 = vadd.f32 %v927, %v895
      %v960 = vadd.f32 %v928, %v896
      %v961 = vadd.f32 %v929, %v897
      %v962 = vadd.f32 %v930, %v898
      %v963 = vadd.f32 %v931, %v899
      %v964 = vadd.f32 %v932, %v900
      %v965 = vadd.f32 %v933, %v901
      %v966 = vadd.f32 %v934, %v902
      %v967 = vadd.f32 %v935, %v903
      %v968 = vadd.f32 %v936, %v904
      %969 = vst [vmem:[#allocation2] sm:$0xff] %v937
      %970 = vst [vmem:[#allocation2 + $0x8] sm:$0xff] %v938
      %971 = vst [vmem:[#allocation2 + $0x10] sm:$0xff] %v939
      %972 = vst [vmem:[#allocation2 + $0x18] sm:$0xff] %v940
      %973 = vst [vmem:[#allocation2 + $0x20] sm:$0xff] %v941
      %974 = vst [vmem:[#allocation2 + $0x28] sm:$0xff] %v942
      %975 = vst [vmem:[#allocation2 + $0x30] sm:$0xff] %v943
      %976 = vst [vmem:[#allocation2 + $0x38] sm:$0xff] %v944
      %977 = vst [vmem:[#allocation2 + $0x40] sm:$0xff] %v945
      %978 = vst [vmem:[#allocation2 + $0x48] sm:$0xff] %v946
      %979 = vst [vmem:[#allocation2 + $0x50] sm:$0xff] %v947
      %980 = vst [vmem:[#allocation2 + $0x58] sm:$0xff] %v948
      %981 = vst [vmem:[#allocation2 + $0x60] sm:$0xff] %v949
      %982 = vst [vmem:[#allocation2 + $0x68] sm:$0xff] %v950
      %983 = vst [vmem:[#allocation2 + $0x70] sm:$0xff] %v951
      %984 = vst [vmem:[#allocation2 + $0x78] sm:$0xff] %v952
      %985 = vst [vmem:[#allocation2 + $0x80] sm:$0xff] %v953
      %986 = vst [vmem:[#allocation2 + $0x88] sm:$0xff] %v954
      %987 = vst [vmem:[#allocation2 + $0x90] sm:$0xff] %v955
      %988 = vst [vmem:[#allocation2 + $0x98] sm:$0xff] %v956
      %989 = vst [vmem:[#allocation2 + $0xa0] sm:$0xff] %v957
      %990 = vst [vmem:[#allocation2 + $0xa8] sm:$0xff] %v958
      %991 = vst [vmem:[#allocation2 + $0xb0] sm:$0xff] %v959
      %992 = vst [vmem:[#allocation2 + $0xb8] sm:$0xff] %v960
      %993 = vst [vmem:[#allocation2 + $0xc0] sm:$0xff] %v961
      %994 = vst [vmem:[#allocation2 + $0xc8] sm:$0xff] %v962
      %995 = vst [vmem:[#allocation2 + $0xd0] sm:$0xff] %v963
      %996 = vst [vmem:[#allocation2 + $0xd8] sm:$0xff] %v964
      %997 = vst [vmem:[#allocation2 + $0xe0] sm:$0xff] %v965
      %998 = vst [vmem:[#allocation2 + $0xe8] sm:$0xff] %v966
      %999 = vst [vmem:[#allocation2 + $0xf0] sm:$0xff] %v967
      %1000 = vst [vmem:[#allocation2 + $0xf8] sm:$0xff] %v968
      %p1001 = scmp.eq.s32.totalorder %s19, 1
      // Predicated region
      $region37: #{tpu_custom_call.1} parent=31 // pred_check
        %p1002 = pneg %p1001
      $region38: #{tpu_custom_call.1} parent=31 // pred_check_branch
        %1004 = sbr.rel (%p1002) target = $region40
      $region39: #{tpu_custom_call.1} parent=31 // pred_region
        %v1005 = vld [vmem:[#allocation2] sm:$0xff]
        %v1006 = vld [vmem:[#allocation2 + $0x8] sm:$0xff]
        %v1007 = vld [vmem:[#allocation2 + $0x10] sm:$0xff]
        %v1008 = vld [vmem:[#allocation2 + $0x18] sm:$0xff]
        %v1009 = vld [vmem:[#allocation2 + $0x20] sm:$0xff]
        %v1010 = vld [vmem:[#allocation2 + $0x28] sm:$0xff]
        %v1011 = vld [vmem:[#allocation2 + $0x30] sm:$0xff]
        %v1012 = vld [vmem:[#allocation2 + $0x38] sm:$0xff]
        %v1013 = vld [vmem:[#allocation2 + $0x40] sm:$0xff]
        %v1014 = vld [vmem:[#allocation2 + $0x48] sm:$0xff]
        %v1015 = vld [vmem:[#allocation2 + $0x50] sm:$0xff]
        %v1016 = vld [vmem:[#allocation2 + $0x58] sm:$0xff]
        %v1017 = vld [vmem:[#allocation2 + $0x60] sm:$0xff]
        %v1018 = vld [vmem:[#allocation2 + $0x68] sm:$0xff]
        %v1019 = vld [vmem:[#allocation2 + $0x70] sm:$0xff]
        %v1020 = vld [vmem:[#allocation2 + $0x78] sm:$0xff]
        %v1021 = vld [vmem:[#allocation2 + $0x80] sm:$0xff]
        %v1022 = vld [vmem:[#allocation2 + $0x88] sm:$0xff]
        %v1023 = vld [vmem:[#allocation2 + $0x90] sm:$0xff]
        %v1024 = vld [vmem:[#allocation2 + $0x98] sm:$0xff]
        %v1025 = vld [vmem:[#allocation2 + $0xa0] sm:$0xff]
        %v1026 = vld [vmem:[#allocation2 + $0xa8] sm:$0xff]
        %v1027 = vld [vmem:[#allocation2 + $0xb0] sm:$0xff]
        %v1028 = vld [vmem:[#allocation2 + $0xb8] sm:$0xff]
        %v1029 = vld [vmem:[#allocation2 + $0xc0] sm:$0xff]
        %v1030 = vld [vmem:[#allocation2 + $0xc8] sm:$0xff]
        %v1031 = vld [vmem:[#allocation2 + $0xd0] sm:$0xff]
        %v1032 = vld [vmem:[#allocation2 + $0xd8] sm:$0xff]
        %v1033 = vld [vmem:[#allocation2 + $0xe0] sm:$0xff]
        %v1034 = vld [vmem:[#allocation2 + $0xe8] sm:$0xff]
        %v1035 = vld [vmem:[#allocation2 + $0xf0] sm:$0xff]
        %v1036 = vld [vmem:[#allocation2 + $0xf8] sm:$0xff]
        %v1037 = vadd.f32 %v1005, %v1006
        %1038 = vadd.xlane.f32.xlu0 %v1037
        %v1039 = vpop.xlane.xlu0 %1038
        %v1040 = vadd.f32 %v1007, %v1008
        %1041 = vadd.xlane.f32.xlu0 %v1040
        %v1042 = vpop.xlane.xlu0 %1041
        %v1043 = vadd.f32 %v1009, %v1010
        %1044 = vadd.xlane.f32.xlu0 %v1043
        %v1045 = vpop.xlane.xlu0 %1044
        %v1046 = vadd.f32 %v1011, %v1012
        %1047 = vadd.xlane.f32.xlu0 %v1046
        %v1048 = vpop.xlane.xlu0 %1047
        %v1049 = vadd.f32 %v1013, %v1014
        %1050 = vadd.xlane.f32.xlu0 %v1049
        %v1051 = vpop.xlane.xlu0 %1050
        %v1052 = vadd.f32 %v1015, %v1016
        %1053 = vadd.xlane.f32.xlu0 %v1052
        %v1054 = vpop.xlane.xlu0 %1053
        %v1055 = vadd.f32 %v1017, %v1018
        %1056 = vadd.xlane.f32.xlu0 %v1055
        %v1057 = vpop.xlane.xlu0 %1056
        %v1058 = vadd.f32 %v1019, %v1020
        %1059 = vadd.xlane.f32.xlu0 %v1058
        %v1060 = vpop.xlane.xlu0 %1059
        %v1061 = vadd.f32 %v1021, %v1022
        %1062 = vadd.xlane.f32.xlu0 %v1061
        %v1063 = vpop.xlane.xlu0 %1062
        %v1064 = vadd.f32 %v1023, %v1024
        %1065 = vadd.xlane.f32.xlu0 %v1064
        %v1066 = vpop.xlane.xlu0 %1065
        %v1067 = vadd.f32 %v1025, %v1026
        %1068 = vadd.xlane.f32.xlu0 %v1067
        %v1069 = vpop.xlane.xlu0 %1068
        %v1070 = vadd.f32 %v1027, %v1028
        %1071 = vadd.xlane.f32.xlu0 %v1070
        %v1072 = vpop.xlane.xlu0 %1071
        %v1073 = vadd.f32 %v1029, %v1030
        %1074 = vadd.xlane.f32.xlu0 %v1073
        %v1075 = vpop.xlane.xlu0 %1074
        %v1076 = vadd.f32 %v1031, %v1032
        %1077 = vadd.xlane.f32.xlu0 %v1076
        %v1078 = vpop.xlane.xlu0 %1077
        %v1079 = vadd.f32 %v1033, %v1034
        %1080 = vadd.xlane.f32.xlu0 %v1079
        %v1081 = vpop.xlane.xlu0 %1080
        %v1082 = vadd.f32 %v1035, %v1036
        %1083 = vadd.xlane.f32.xlu0 %v1082
        %v1084 = vpop.xlane.xlu0 %1083
        %v1085 = vmul.f32 %v1039, 0.0009765625
        %v1086 = vmul.f32 %v1042, 0.0009765625
        %v1087 = vmul.f32 %v1045, 0.0009765625
        %v1088 = vmul.f32 %v1048, 0.0009765625
        %v1089 = vmul.f32 %v1051, 0.0009765625
        %v1090 = vmul.f32 %v1054, 0.0009765625
        %v1091 = vmul.f32 %v1057, 0.0009765625
        %v1092 = vmul.f32 %v1060, 0.0009765625
        %v1093 = vmul.f32 %v1063, 0.0009765625
        %v1094 = vmul.f32 %v1066, 0.0009765625
        %v1095 = vmul.f32 %v1069, 0.0009765625
        %v1096 = vmul.f32 %v1072, 0.0009765625
        %v1097 = vmul.f32 %v1075, 0.0009765625
        %v1098 = vmul.f32 %v1078, 0.0009765625
        %v1099 = vmul.f32 %v1081, 0.0009765625
        %v1100 = vmul.f32 %v1084, 0.0009765625
        %v1101 = vpack.c.bf16 %v1086, %v1085
        %v1102 = vpack.c.bf16 %v1088, %v1087
        %v1103 = vpack.c.bf16 %v1090, %v1089
        %v1104 = vpack.c.bf16 %v1092, %v1091
        %v1105 = vpack.c.bf16 %v1094, %v1093
        %v1106 = vpack.c.bf16 %v1096, %v1095
        %v1107 = vpack.c.bf16 %v1098, %v1097
        %v1108 = vpack.c.bf16 %v1100, %v1099
        %v1118 = vunpack.c.l.s4 839922192
        %v1119 = vunpack.c.0.s8 %v1118
        %v1120 = vlaneseq
        %v1121 = vshrl.u32 %v1120, 7
        %v1122 = vsub.s32 %v1119, %v1121
        %v1123 = vrot.slane %v1101, %v1122
        %v1125 = vunpack.c.l.s4 1985246804
        %v1126 = vunpack.c.0.s8 %v1125
        %v1127 = vlaneseq
        %v1128 = vshrl.u32 %v1127, 7
        %v1129 = vsub.s32 %v1126, %v1128
        %v1130 = vrot.slane %v1101, %v1129
        %v1132 = vunpack.c.l.s4 839922192
        %v1133 = vunpack.c.0.s8 %v1132
        %v1134 = vlaneseq
        %v1135 = vshrl.u32 %v1134, 7
        %v1136 = vsub.s32 %v1133, %v1135
        %v1137 = vrot.slane %v1102, %v1136
        %v1139 = vunpack.c.l.s4 1985246804
        %v1140 = vunpack.c.0.s8 %v1139
        %v1141 = vlaneseq
        %v1142 = vshrl.u32 %v1141, 7
        %v1143 = vsub.s32 %v1140, %v1142
        %v1144 = vrot.slane %v1102, %v1143
        %v1146 = vunpack.c.l.s4 839922192
        %v1147 = vunpack.c.0.s8 %v1146
        %v1148 = vlaneseq
        %v1149 = vshrl.u32 %v1148, 7
        %v1150 = vsub.s32 %v1147, %v1149
        %v1151 = vrot.slane %v1103, %v1150
        %v1153 = vunpack.c.l.s4 1985246804
        %v1154 = vunpack.c.0.s8 %v1153
        %v1155 = vlaneseq
        %v1156 = vshrl.u32 %v1155, 7
        %v1157 = vsub.s32 %v1154, %v1156
        %v1158 = vrot.slane %v1103, %v1157
        %v1160 = vunpack.c.l.s4 839922192
        %v1161 = vunpack.c.0.s8 %v1160
        %v1162 = vlaneseq
        %v1163 = vshrl.u32 %v1162, 7
        %v1164 = vsub.s32 %v1161, %v1163
        %v1165 = vrot.slane %v1104, %v1164
        %v1167 = vunpack.c.l.s4 1985246804
        %v1168 = vunpack.c.0.s8 %v1167
        %v1169 = vlaneseq
        %v1170 = vshrl.u32 %v1169, 7
        %v1171 = vsub.s32 %v1168, %v1170
        %v1172 = vrot.slane %v1104, %v1171
        %v1174 = vunpack.c.l.s4 839922192
        %v1175 = vunpack.c.0.s8 %v1174
        %v1176 = vlaneseq
        %v1177 = vshrl.u32 %v1176, 7
        %v1178 = vsub.s32 %v1175, %v1177
        %v1179 = vrot.slane %v1105, %v1178
        %v1181 = vunpack.c.l.s4 1985246804
        %v1182 = vunpack.c.0.s8 %v1181
        %v1183 = vlaneseq
        %v1184 = vshrl.u32 %v1183, 7
        %v1185 = vsub.s32 %v1182, %v1184
        %v1186 = vrot.slane %v1105, %v1185
        %v1188 = vunpack.c.l.s4 839922192
        %v1189 = vunpack.c.0.s8 %v1188
        %v1190 = vlaneseq
        %v1191 = vshrl.u32 %v1190, 7
        %v1192 = vsub.s32 %v1189, %v1191
        %v1193 = vrot.slane %v1106, %v1192
        %v1195 = vunpack.c.l.s4 1985246804
        %v1196 = vunpack.c.0.s8 %v1195
        %v1197 = vlaneseq
        %v1198 = vshrl.u32 %v1197, 7
        %v1199 = vsub.s32 %v1196, %v1198
        %v1200 = vrot.slane %v1106, %v1199
        %v1202 = vunpack.c.l.s4 839922192
        %v1203 = vunpack.c.0.s8 %v1202
        %v1204 = vlaneseq
        %v1205 = vshrl.u32 %v1204, 7
        %v1206 = vsub.s32 %v1203, %v1205
        %v1207 = vrot.slane %v1107, %v1206
        %v1209 = vunpack.c.l.s4 1985246804
        %v1210 = vunpack.c.0.s8 %v1209
        %v1211 = vlaneseq
        %v1212 = vshrl.u32 %v1211, 7
        %v1213 = vsub.s32 %v1210, %v1212
        %v1214 = vrot.slane %v1107, %v1213
        %v1216 = vunpack.c.l.s4 839922192
        %v1217 = vunpack.c.0.s8 %v1216
        %v1218 = vlaneseq
        %v1219 = vshrl.u32 %v1218, 7
        %v1220 = vsub.s32 %v1217, %v1219
        %v1221 = vrot.slane %v1108, %v1220
        %v1223 = vunpack.c.l.s4 1985246804
        %v1224 = vunpack.c.0.s8 %v1223
        %v1225 = vlaneseq
        %v1226 = vshrl.u32 %v1225, 7
        %v1227 = vsub.s32 %v1224, %v1226
        %v1228 = vrot.slane %v1108, %v1227
        %vm1245 = vcmask 3072
        %1246 = vst.msk [vmem:[%s198] sm:$0xf] %vm1245, %v1123
        %1247 = vst.msk [vmem:[%s198 + $0x4] sm:$0xf] %vm1245, %v1130
        %1248 = vst.msk [vmem:[%s198 + $0x8] sm:$0xf] %vm1245, %v1137
        %1249 = vst.msk [vmem:[%s198 + $0xc] sm:$0xf] %vm1245, %v1144
        %1250 = vst.msk [vmem:[%s198 + $0x10] sm:$0xf] %vm1245, %v1151
        %1251 = vst.msk [vmem:[%s198 + $0x14] sm:$0xf] %vm1245, %v1158
        %1252 = vst.msk [vmem:[%s198 + $0x18] sm:$0xf] %vm1245, %v1165
        %1253 = vst.msk [vmem:[%s198 + $0x1c] sm:$0xf] %vm1245, %v1172
        %1254 = vst.msk [vmem:[%s198 + $0x20] sm:$0xf] %vm1245, %v1179
        %1255 = vst.msk [vmem:[%s198 + $0x24] sm:$0xf] %vm1245, %v1186
        %1256 = vst.msk [vmem:[%s198 + $0x28] sm:$0xf] %vm1245, %v1193
        %1257 = vst.msk [vmem:[%s198 + $0x2c] sm:$0xf] %vm1245, %v1200
        %1258 = vst.msk [vmem:[%s198 + $0x30] sm:$0xf] %vm1245, %v1207
        %1259 = vst.msk [vmem:[%s198 + $0x34] sm:$0xf] %vm1245, %v1214
        %1260 = vst.msk [vmem:[%s198 + $0x38] sm:$0xf] %vm1245, %v1221
        %1261 = vst.msk [vmem:[%s198 + $0x3c] sm:$0xf] %vm1245, %v1228
      $region40: #{tpu_custom_call.1} parent=31 // pred_fallthru
        _
      %p1262 = scmp.lt.s32.totalorder %s18, 3
      %s1263 = scalar_select %p1262, %s18, 3
      %s1264 = smul.addr %s1263, 16
      %s1265 = smul.addr %s1264, 4
      %s1266 = scalar_lea.vmem %s3, %s1265
      // Predicated region
      $region41: #{tpu_custom_call.1} parent=31 // pred_check
        %p1267 = pneg %p114
      $region42: #{tpu_custom_call.1} parent=31 // pred_check_branch
        %1269 = sbr.rel (%p1267) target = $region44
      $region43: #{tpu_custom_call.1} parent=31 // pred_region
        _
      $region44: #{tpu_custom_call.1} parent=31 // pred_fallthru
        _
    $region32: #{tpu_custom_call.1} parent=5 // pred_fallthru
      _
    %p1270 = scmp.le.s32.totalorder 2, %s9
    // Predicated region
    $region45: #{tpu_custom_call.1} parent=5 // pred_check
      %p1271 = pneg %p1270
    $region46: #{tpu_custom_call.1} parent=5 // pred_check_branch
      %1273 = sbr.rel (%p1271) target = $region48
    $region47: #{tpu_custom_call.1} parent=5 // pred_region
      %s1274 = ssub.s32 %s9, 2
      // Predicated region
      $region49: #{tpu_custom_call.1} parent=47 // pred_check
        %p1275 = pneg %p120
      $region50: #{tpu_custom_call.1} parent=47 // pred_check_branch
        %1277 = sbr.rel (%p1275) target = $region52
      $region51: #{tpu_custom_call.1} parent=47 // pred_region
        %p1278 = scmp.lt.s32.totalorder %s20, 3
        %s1279 = scalar_select %p1278, %s20, 3
        %s1280 = smul.addr %s1279, 16
        %s1281 = smul.addr %s1280, 4
        %s1282 = scalar_lea.vmem %s3, %s1281
      $region52: #{tpu_custom_call.1} parent=47 // pred_fallthru
        _
    $region48: #{tpu_custom_call.1} parent=5 // pred_fallthru
      _
  $region6: #{tpu_custom_call.1} parent=0 // loop_footer
    %s13 = sadd.s32 1, %s9
  $region7: #{tpu_custom_call.1} parent=0 // loop_footer_branch
    %8 = sbr.rel target = $region3
  $region8: #{tpu_custom_call.1} parent=0 // loop_exit
    _

</llo_original>
